<compile_context>
chip_gen: v5e
topology: v5e:2x2
jax: 0.10.0
libtpu: 0.0.40
codegen_flags: <defaults>
</compile_context>

<pallas_src>
import jax
import jax.numpy as jnp
from jax.experimental import pallas as pl
from jax.experimental.pallas import tpu as pltpu


def _round_up(x, m):
    return (x + m - 1) // m * m


def _cdiv(a, b):
    return -(-a // b)


def _gelu_exact(x):
    # PyTorch nn.GELU() default = exact erf formulation (computed in f32).
    return 0.5 * x * (1.0 + jax.lax.erf(x * 0.7071067811865476))


def _vmem_capacity_bytes():
    try:
        return int(pltpu.get_tpu_info().vmem_capacity_bytes)
    except Exception:
        return 64 * 1024 * 1024  # conservative (v7x per-TC VMEM)


# ---------------- resident-weights kernel (weights fit in VMEM) ----------------
def residual_block_kernel(x_ref, wcat_ref, bcat_ref, w2_ref, b2_ref, o_ref):
    f_out_p = w2_ref.shape[1]          # padded out-features (multiple of 128)
    x = x_ref[...]                     # (block_b, F_in_p) bf16

    # Fused [Linear1(+BN1) || skip-Linear]: one wide MXU matmul, f32 accumulate.
    hs = jnp.dot(x, wcat_ref[...], preferred_element_type=jnp.float32)
    hs = hs + bcat_ref[...]
    h = _gelu_exact(hs[:, :f_out_p])   # GELU after folded BN1 (Dropout = identity, eval)
    skip = hs[:, f_out_p:]

    # Linear2(+BN2) + GELU.
    h2 = jnp.dot(h.astype(w2_ref.dtype), w2_ref[...],
                 preferred_element_type=jnp.float32) + b2_ref[...]
    h2 = _gelu_exact(h2)
    # TODO(synk): training-mode Dropout (Bernoulli mask via pltpu.prng_random_bits)
    # not emitted; eval-mode identity.

    o_ref[...] = (h2 + skip).astype(o_ref.dtype)


# ---------------- K-tiled kernel (large F: tile the f_in reduction axis) ----------------
def residual_block_kernel_ktiled(x_ref, wcat_ref, bcat_ref, w2_ref, b2_ref, o_ref, acc_ref):
    k = pl.program_id(1)

    @pl.when(k == 0)
    def _():
        acc_ref[...] = jnp.zeros_like(acc_ref)

    acc_ref[...] += jnp.dot(x_ref[...], wcat_ref[...], preferred_element_type=jnp.float32)

    @pl.when(k == pl.num_programs(1) - 1)
    def _():
        f_out_p = w2_ref.shape[1]
        hs = acc_ref[...] + bcat_ref[...]
        h = _gelu_exact(hs[:, :f_out_p])
        skip = hs[:, f_out_p:]
        h2 = jnp.dot(h.astype(w2_ref.dtype), w2_ref[...],
                     preferred_element_type=jnp.float32) + b2_ref[...]
        h2 = _gelu_exact(h2)
        o_ref[...] = (h2 + skip).astype(o_ref.dtype)
    # TODO(synk): if f_out_p^2 weights (w2) ever exceed VMEM as well, w2 would need its
    # own tiling; not needed for the feature sizes this module is used with.


def prepare_params(p, f_in, f_out, compute_dtype=jnp.bfloat16, feature_align=128):
    """Fold eval-mode BN into the Linear weights/biases, fuse w1 with the skip
    weight, zero-pad feature dims to multiples of `feature_align` (128; consider 256
    on v6e/v7x where the MXU native tile is 256x256), cast weights to bf16."""
    f_in_p = _round_up(f_in, feature_align)
    f_out_p = _round_up(f_out, feature_align)

    # BN(y) = s*y + t applied to y = x@w + b  ->  x@(w*s) + (b*s + t)
    w1f = p["w1"] * p["s1"]
    b1f = p["b1"] * p["s1"] + p["t1"]
    w2f = p["w2"] * p["s2"]
    b2f = p["b2"] * p["s2"] + p["t2"]

    def pad2(a, r, c):
        return jnp.pad(a, ((0, r - a.shape[0]), (0, c - a.shape[1])))

    w1f = pad2(w1f, f_in_p, f_out_p)
    wsf = pad2(p["ws"], f_in_p, f_out_p)
    w2f = pad2(w2f, f_out_p, f_out_p)
    b1f = pad2(b1f, 1, f_out_p)
    bsf = pad2(p["bs"], 1, f_out_p)
    b2f = pad2(b2f, 1, f_out_p)

    w_cat = jnp.concatenate([w1f, wsf], axis=1).astype(compute_dtype)  # (F_in_p, 2*F_out_p)
    b_cat = jnp.concatenate([b1f, bsf], axis=1)                        # (1, 2*F_out_p) f32

    return dict(w_cat=w_cat, b_cat=b_cat,
                w2=w2f.astype(compute_dtype), b2=b2f,
                f_in=f_in, f_out=f_out, f_in_p=f_in_p, f_out_p=f_out_p)


def residual_block(x, folded, *, block_b=256, block_k=None,
                   out_dtype=jnp.bfloat16, force_k_tiling=False):
    """x: (B, in_features).  folded: output of prepare_params()."""
    B, f_in = x.shape
    f_in_p, f_out_p = folded["f_in_p"], folded["f_out_p"]
    f_out = folded["f_out"]
    w_cat, b_cat, w2, b2 = folded["w_cat"], folded["b_cat"], folded["w2"], folded["b2"]
    compute_dtype = w_cat.dtype
    cbytes = jnp.dtype(compute_dtype).itemsize
    obytes = jnp.dtype(out_dtype).itemsize

    # ---- batch tiling: >= 2 grid steps for v7x megacore, <= ~15 rows padding waste ----
    n_b = max(1, _cdiv(B, block_b))
    if B >= 32:
        n_b = max(n_b, 2)
    blk_b = min(_round_up(_cdiv(B, n_b), 16), _round_up(B, 8))
    n_b = _cdiv(B, blk_b)

    # ---- activation prep: single fused pad+cast only when actually needed ----
    if x.dtype == compute_dtype and f_in == f_in_p:
        x_p = x
    else:
        x_p = jnp.pad(x, ((0, 0), (0, f_in_p - f_in))).astype(compute_dtype)

    vmem_cap = _vmem_capacity_bytes()
    budget = int(vmem_cap * 0.85)

    weight_bytes = (w_cat.size + w2.size) * cbytes + (b_cat.size + b2.size) * 4
    use_kt = bool(force_k_tiling) or weight_bytes > budget // 3

    n_k = 1
    if use_kt:
        if block_k is None:
            block_k = f_in_p
            for cand in (512, 384, 256, 128):
                if f_in_p % cand == 0:
                    block_k = cand
                    break
        assert block_k % 128 == 0 and f_in_p % block_k == 0, "block_k must divide padded f_in"
        n_k = f_in_p // block_k

    flops = 2 * B * (f_in_p * 2 * f_out_p + f_out_p * f_out_p)
    cost = pl.CostEstimate(
        flops=int(flops),
        transcendentals=int(2 * B * f_out_p),          # two erf-GELUs per element
        bytes_accessed=int(B * f_in_p * cbytes + weight_bytes + B * f_out_p * obytes))

    def build(single_buffer_weights):
        def cspec(shape, index_map):
            # Constant index_map -> never re-fetched; single-buffer to halve VMEM.
            if single_buffer_weights:
                return pl.BlockSpec(shape, index_map, pipeline_mode=pl.Buffered(1))
            return pl.BlockSpec(shape, index_map)

        w_factor = 1 if single_buffer_weights else 2

        if not use_kt:
            grid = (n_b,)
            in_specs = [
                pl.BlockSpec((blk_b, f_in_p), lambda i: (i, 0)),        # x tile
                cspec((f_in_p, 2 * f_out_p), lambda i: (0, 0)),         # [w1*s1 || w_skip]
                cspec((1, 2 * f_out_p), lambda i: (0, 0)),              # [b1' || b_skip]
                cspec((f_out_p, f_out_p), lambda i: (0, 0)),            # w2*s2
                cspec((1, f_out_p), lambda i: (0, 0)),                  # b2'
            ]
            out_specs = pl.BlockSpec((blk_b, f_out_p), lambda i: (i, 0))
            scratch = []
            kernel = residual_block_kernel
            sem = ("parallel",)
            vmem_est = (2 * blk_b * f_in_p * cbytes
                        + 2 * blk_b * f_out_p * obytes
                        + w_factor * weight_bytes
                        + 3 * blk_b * 2 * f_out_p * 4)
        else:
            grid = (n_b, n_k)
            in_specs = [
                pl.BlockSpec((blk_b, block_k), lambda i, k: (i, k)),    # x K-tile
                pl.BlockSpec((block_k, 2 * f_out_p), lambda i, k: (k, 0)),
                cspec((1, 2 * f_out_p), lambda i, k: (0, 0)),
                cspec((f_out_p, f_out_p), lambda i, k: (0, 0)),
                cspec((1, f_out_p), lambda i, k: (0, 0)),
            ]
            out_specs = pl.BlockSpec((blk_b, f_out_p), lambda i, k: (i, 0))
            scratch = [pltpu.VMEM((blk_b, 2 * f_out_p), jnp.float32)]
            kernel = residual_block_kernel_ktiled
            sem = ("parallel", "arbitrary")
            vmem_est = (2 * blk_b * block_k * cbytes
                        + 2 * block_k * 2 * f_out_p * cbytes
                        + w_factor * (w2.size * cbytes + (b_cat.size + b2.size) * 4)
                        + blk_b * 2 * f_out_p * 4
                        + 2 * blk_b * f_out_p * obytes
                        + 2 * blk_b * 2 * f_out_p * 4)

        vmem_limit = min(max(int(vmem_est), 16 * 1024 * 1024), budget)

        return pl.pallas_call(
            kernel,
            out_shape=jax.ShapeDtypeStruct((B, f_out_p), out_dtype),
            grid_spec=pltpu.PrefetchScalarGridSpec(
                num_scalar_prefetch=0,
                grid=grid,
                in_specs=in_specs,
                out_specs=out_specs,
                scratch_shapes=scratch),
            compiler_params=pltpu.CompilerParams(
                dimension_semantics=sem,
                vmem_limit_bytes=vmem_limit),
            cost_estimate=cost,
        )

    try:
        out_p = build(True)(x_p, w_cat, b_cat, w2, b2)
    except Exception:
        # Fallback: default (double) buffering if pipeline_mode=Buffered(1) is rejected.
        out_p = build(False)(x_p, w_cat, b_cat, w2, b2)

    return out_p[:, :f_out]


def make_params(key, in_features, out_features, eps=1e-5):
    """Deterministic synthetic parameters; BatchNorm (eval) expressed as scale/shift."""
    ks = jax.random.split(key, 16)

    def lin(kw, kb, fin, fout):
        w = jax.random.normal(kw, (fin, fout), jnp.float32) * (1.0 / jnp.sqrt(fin))
        b = jax.random.normal(kb, (1, fout), jnp.float32) * 0.1
        return w, b

    w1, b1 = lin(ks[0], ks[1], in_features, out_features)
    w2, b2 = lin(ks[2], ks[3], out_features, out_features)
    ws, bs = lin(ks[4], ks[5], in_features, out_features)

    def bn_fold(kg, kb, km, kv, fout):
        gamma = 1.0 + 0.1 * jax.random.normal(kg, (1, fout), jnp.float32)
        beta = 0.1 * jax.random.normal(kb, (1, fout), jnp.float32)
        mean = 0.1 * jax.random.normal(km, (1, fout), jnp.float32)
        var = jax.random.uniform(kv, (1, fout), jnp.float32, 0.5, 1.5)
        scale = gamma / jnp.sqrt(var + eps)
        shift = beta - mean * scale
        return scale, shift

    s1, t1 = bn_fold(ks[6], ks[7], ks[8], ks[9], out_features)
    s2, t2 = bn_fold(ks[10], ks[11], ks[12], ks[13], out_features)

    return dict(w1=w1, b1=b1, s1=s1, t1=t1,
                w2=w2, b2=b2, s2=s2, t2=t2,
                ws=ws, bs=bs)


def residual_block_ref_f32(x, p):
    """Pure f32 reference matching PyTorch eval-mode semantics."""
    h = x @ p["w1"] + p["b1"]
    h = h * p["s1"] + p["t1"]
    h = jax.nn.gelu(h, approximate=False)
    h = h @ p["w2"] + p["b2"]
    h = h * p["s2"] + p["t2"]
    h = jax.nn.gelu(h, approximate=False)
    return h + (x @ p["ws"] + p["bs"])


def residual_block_ref_mirrored(x, folded):
    """Reference mirroring the kernel's bf16-weight / f32-accumulate arithmetic."""
    f_in = x.shape[1]
    f_in_p, f_out_p, f_out = folded["f_in_p"], folded["f_out_p"], folded["f_out"]
    xb = jnp.pad(x, ((0, 0), (0, f_in_p - f_in))).astype(folded["w_cat"].dtype)
    hs = jnp.dot(xb, folded["w_cat"], preferred_element_type=jnp.float32) + folded["b_cat"]
    h = jax.nn.gelu(hs[:, :f_out_p], approximate=False)
    skip = hs[:, f_out_p:]
    h2 = jnp.dot(h.astype(folded["w2"].dtype), folded["w2"],
                 preferred_element_type=jnp.float32) + folded["b2"]
    h2 = jax.nn.gelu(h2, approximate=False)
    return (h2 + skip)[:, :f_out]


if __name__ == "__main__":
    key = jax.random.PRNGKey(0)
    kx, kp, kx2, kp2 = jax.random.split(key, 4)

    # ---- Test 1: resident-weights path (small shapes) ----
    B, F_in, F_out = 8, 32, 64
    x = jax.random.normal(kx, (B, F_in), jnp.float32)
    raw = make_params(kp, F_in, F_out)
    folded = prepare_params(raw, F_in, F_out)

    out = residual_block(x, folded, block_b=256)
    out = jax.block_until_ready(out)
    assert out.shape == (B, F_out)
    out_f32 = out.astype(jnp.float32)

    ref_m = residual_block_ref_mirrored(x, folded)
    assert jnp.allclose(out_f32, ref_m, atol=5e-2, rtol=5e-2), "mismatch vs bf16-mirrored reference"

    ref_f = residual_block_ref_f32(x, raw)
    assert jnp.allclose(out_f32, ref_f, atol=1.2e-1, rtol=1.2e-1), "mismatch vs f32 reference"

    # ---- Test 2: K-tiled fallback path (forced, still small shapes) ----
    B2, F_in2, F_out2 = 16, 256, 128
    x2 = jax.random.normal(kx2, (B2, F_in2), jnp.float32)
    raw2 = make_params(kp2, F_in2, F_out2)
    folded2 = prepare_params(raw2, F_in2, F_out2)

    out2 = residual_block(x2, folded2, force_k_tiling=True, block_k=128)
    out2 = jax.block_until_ready(out2)
    assert out2.shape == (B2, F_out2)
    ref2 = residual_block_ref_mirrored(x2, folded2)
    assert jnp.allclose(out2.astype(jnp.float32), ref2, atol=5e-2, rtol=5e-2), \
        "mismatch vs bf16-mirrored reference (K-tiled path)"

    print("KERNEL_OK")
</pallas_src>

<mosaic_0001>
module attributes {stable_mosaic.version = 11 : i64} {
  func.func @residual_block_kernel(%arg0: i32, %arg1: memref<8x128xbf16, #tpu.memory_space<vmem>>, %arg2: memref<128x256xbf16, #tpu.memory_space<vmem>>, %arg3: memref<1x256xf32, #tpu.memory_space<vmem>>, %arg4: memref<128x128xbf16, #tpu.memory_space<vmem>>, %arg5: memref<1x128xf32, #tpu.memory_space<vmem>>, %arg6: memref<8x128xbf16, #tpu.memory_space<vmem>>) attributes {dimension_semantics = [#tpu.dimension_semantics<parallel>], iteration_bounds = array<i64: 1>, scalar_prefetch = 0 : i64, scratch_operands = 0 : i64, tpu.core_type = #tpu.core_type<tc>, window_params = [{transform_indices = @transform_0, window_bounds = array<i64: 8, 128>}, {pipeline_mode = #tpu.pipeline_mode<synchronous>, transform_indices = @transform_1, window_bounds = array<i64: 128, 256>}, {pipeline_mode = #tpu.pipeline_mode<synchronous>, transform_indices = @transform_2, window_bounds = array<i64: 1, 256>}, {pipeline_mode = #tpu.pipeline_mode<synchronous>, transform_indices = @transform_3, window_bounds = array<i64: 128, 128>}, {pipeline_mode = #tpu.pipeline_mode<synchronous>, transform_indices = @transform_4, window_bounds = array<i64: 1, 128>}, {transform_indices = @transform_5, window_bounds = array<i64: 8, 128>}]} {
    %c0 = arith.constant 0 : index
    %c0_0 = arith.constant 0 : index
    %0 = vector.load %arg1[%c0, %c0_0] : memref<8x128xbf16, #tpu.memory_space<vmem>>, vector<8x128xbf16>
    %c0_1 = arith.constant 0 : index
    %c0_2 = arith.constant 0 : index
    %1 = vector.load %arg2[%c0_1, %c0_2] : memref<128x256xbf16, #tpu.memory_space<vmem>>, vector<128x256xbf16>
    %cst = arith.constant dense<0.000000e+00> : vector<8x256xf32>
    %2 = tpu.matmul %0, %1, %cst {dimension_numbers = #tpu.dot_dimension_numbers<[1], [0], [0], [1], [0, 0, 1, 1], [], []>} : vector<8x128xbf16>, vector<128x256xbf16>, vector<8x256xf32> -> vector<8x256xf32>
    %c0_3 = arith.constant 0 : index
    %c0_4 = arith.constant 0 : index
    %3 = vector.load %arg3[%c0_3, %c0_4] : memref<1x256xf32, #tpu.memory_space<vmem>>, vector<1x256xf32>
    %4 = vector.broadcast %3 : vector<1x256xf32> to vector<8x256xf32>
    %5 = arith.addf %2, %4 : vector<8x256xf32>
    %6 = vector.extract_strided_slice %5 {offsets = [0, 0], sizes = [8, 128], strides = [1, 1]} : vector<8x256xf32> to vector<8x128xf32>
    %cst_5 = arith.constant 5.000000e-01 : f32
    %7 = vector.broadcast %cst_5 : f32 to vector<8x128xf32>
    %8 = arith.mulf %7, %6 : vector<8x128xf32>
    %cst_6 = arith.constant 0.707106769 : f32
    %9 = vector.broadcast %cst_6 : f32 to vector<8x128xf32>
    %10 = arith.mulf %6, %9 : vector<8x128xf32>
    %11 = math.erf %10 : vector<8x128xf32>
    %cst_7 = arith.constant 1.000000e+00 : f32
    %12 = vector.broadcast %cst_7 : f32 to vector<8x128xf32>
    %13 = arith.addf %12, %11 : vector<8x128xf32>
    %14 = arith.mulf %8, %13 : vector<8x128xf32>
    %15 = vector.extract_strided_slice %5 {offsets = [0, 128], sizes = [8, 128], strides = [1, 1]} : vector<8x256xf32> to vector<8x128xf32>
    %16 = arith.truncf %14 : vector<8x128xf32> to vector<8x128xbf16>
    %c0_8 = arith.constant 0 : index
    %c0_9 = arith.constant 0 : index
    %17 = vector.load %arg4[%c0_8, %c0_9] : memref<128x128xbf16, #tpu.memory_space<vmem>>, vector<128x128xbf16>
    %cst_10 = arith.constant dense<0.000000e+00> : vector<8x128xf32>
    %18 = tpu.matmul %16, %17, %cst_10 {dimension_numbers = #tpu.dot_dimension_numbers<[1], [0], [0], [1], [0, 0, 1, 1], [], []>} : vector<8x128xbf16>, vector<128x128xbf16>, vector<8x128xf32> -> vector<8x128xf32>
    %c0_11 = arith.constant 0 : index
    %c0_12 = arith.constant 0 : index
    %19 = vector.load %arg5[%c0_11, %c0_12] : memref<1x128xf32, #tpu.memory_space<vmem>>, vector<1x128xf32>
    %20 = vector.broadcast %19 : vector<1x128xf32> to vector<8x128xf32>
    %21 = arith.addf %18, %20 : vector<8x128xf32>
    %cst_13 = arith.constant 5.000000e-01 : f32
    %22 = vector.broadcast %cst_13 : f32 to vector<8x128xf32>
    %23 = arith.mulf %22, %21 : vector<8x128xf32>
    %cst_14 = arith.constant 0.707106769 : f32
    %24 = vector.broadcast %cst_14 : f32 to vector<8x128xf32>
    %25 = arith.mulf %21, %24 : vector<8x128xf32>
    %26 = math.erf %25 : vector<8x128xf32>
    %cst_15 = arith.constant 1.000000e+00 : f32
    %27 = vector.broadcast %cst_15 : f32 to vector<8x128xf32>
    %28 = arith.addf %27, %26 : vector<8x128xf32>
    %29 = arith.mulf %23, %28 : vector<8x128xf32>
    %30 = arith.addf %29, %15 : vector<8x128xf32>
    %31 = arith.truncf %30 : vector<8x128xf32> to vector<8x128xbf16>
    %c0_16 = arith.constant 0 : index
    %c0_17 = arith.constant 0 : index
    %32 = vector.load %arg6[%c0_16, %c0_17] : memref<8x128xbf16, #tpu.memory_space<vmem>>, vector<8x128xbf16>
    tpu.vector_store %arg6[%c0_16, %c0_17], %31 {strides = array<i32>} : memref<8x128xbf16, #tpu.memory_space<vmem>>, vector<8x128xbf16>,
    return
  }
  func.func @transform_0(%arg0: i32) -> (i32, i32) {
    %c0_i32 = arith.constant 0 : i32
    %c0_i32_0 = arith.constant 0 : i32
    return %arg0, %c0_i32 : i32, i32
  }
  func.func @transform_1(%arg0: i32) -> (i32, i32) {
    %c0_i32 = arith.constant 0 : i32
    %c0_i32_0 = arith.constant 0 : i32
    %c0_i32_1 = arith.constant 0 : i32
    return %c0_i32, %c0_i32_0 : i32, i32
  }
  func.func @transform_2(%arg0: i32) -> (i32, i32) {
    %c0_i32 = arith.constant 0 : i32
    %c0_i32_0 = arith.constant 0 : i32
    %c0_i32_1 = arith.constant 0 : i32
    return %c0_i32, %c0_i32_0 : i32, i32
  }
  func.func @transform_3(%arg0: i32) -> (i32, i32) {
    %c0_i32 = arith.constant 0 : i32
    %c0_i32_0 = arith.constant 0 : i32
    %c0_i32_1 = arith.constant 0 : i32
    return %c0_i32, %c0_i32_0 : i32, i32
  }
  func.func @transform_4(%arg0: i32) -> (i32, i32) {
    %c0_i32 = arith.constant 0 : i32
    %c0_i32_0 = arith.constant 0 : i32
    %c0_i32_1 = arith.constant 0 : i32
    return %c0_i32, %c0_i32_0 : i32, i32
  }
  func.func @transform_5(%arg0: i32) -> (i32, i32) {
    %c0_i32 = arith.constant 0 : i32
    %c0_i32_0 = arith.constant 0 : i32
    return %arg0, %c0_i32 : i32, i32
  }
}

module attributes {stable_mosaic.version = 11 : i64} {
  func.func @residual_block_kernel(%arg0: i32, %arg1: memref<8x128xbf16, #tpu.memory_space<vmem>>, %arg2: memref<128x256xbf16, #tpu.memory_space<vmem>>, %arg3: memref<1x256xf32, #tpu.memory_space<vmem>>, %arg4: memref<128x128xbf16, #tpu.memory_space<vmem>>, %arg5: memref<1x128xf32, #tpu.memory_space<vmem>>, %arg6: memref<8x128xbf16, #tpu.memory_space<vmem>>) attributes {dimension_semantics = [#tpu.dimension_semantics<parallel>], iteration_bounds = array<i64: 1>, scalar_prefetch = 0 : i64, scratch_operands = 0 : i64, tpu.core_type = #tpu.core_type<tc>, window_params = [{transform_indices = @transform_0, window_bounds = array<i64: 8, 128>}, {pipeline_mode = #tpu.pipeline_mode<synchronous>, transform_indices = @transform_1, window_bounds = array<i64: 128, 256>}, {pipeline_mode = #tpu.pipeline_mode<synchronous>, transform_indices = @transform_2, window_bounds = array<i64: 1, 256>}, {pipeline_mode = #tpu.pipeline_mode<synchronous>, transform_indices = @transform_3, window_bounds = array<i64: 128, 128>}, {pipeline_mode = #tpu.pipeline_mode<synchronous>, transform_indices = @transform_4, window_bounds = array<i64: 1, 128>}, {transform_indices = @transform_5, window_bounds = array<i64: 8, 128>}]} {
    %c0 = arith.constant 0 : index
    %c0_0 = arith.constant 0 : index
    %0 = vector.load %arg1[%c0, %c0_0] : memref<8x128xbf16, #tpu.memory_space<vmem>>, vector<8x128xbf16>
    %c0_1 = arith.constant 0 : index
    %c0_2 = arith.constant 0 : index
    %1 = vector.load %arg2[%c0_1, %c0_2] : memref<128x256xbf16, #tpu.memory_space<vmem>>, vector<128x256xbf16>
    %cst = arith.constant dense<0.000000e+00> : vector<8x256xf32>
    %2 = tpu.matmul %0, %1, %cst {dimension_numbers = #tpu.dot_dimension_numbers<[1], [0], [0], [1], [0, 0, 1, 1], [], []>} : vector<8x128xbf16>, vector<128x256xbf16>, vector<8x256xf32> -> vector<8x256xf32>
    %c0_3 = arith.constant 0 : index
    %c0_4 = arith.constant 0 : index
    %3 = vector.load %arg3[%c0_3, %c0_4] : memref<1x256xf32, #tpu.memory_space<vmem>>, vector<1x256xf32>
    %4 = vector.broadcast %3 : vector<1x256xf32> to vector<8x256xf32>
    %5 = arith.addf %2, %4 : vector<8x256xf32>
    %6 = vector.extract_strided_slice %5 {offsets = [0, 0], sizes = [8, 128], strides = [1, 1]} : vector<8x256xf32> to vector<8x128xf32>
    %cst_5 = arith.constant 5.000000e-01 : f32
    %7 = vector.broadcast %cst_5 : f32 to vector<8x128xf32>
    %8 = arith.mulf %7, %6 : vector<8x128xf32>
    %cst_6 = arith.constant 0.707106769 : f32
    %9 = vector.broadcast %cst_6 : f32 to vector<8x128xf32>
    %10 = arith.mulf %6, %9 : vector<8x128xf32>
    %11 = math.erf %10 : vector<8x128xf32>
    %cst_7 = arith.constant 1.000000e+00 : f32
    %12 = vector.broadcast %cst_7 : f32 to vector<8x128xf32>
    %13 = arith.addf %12, %11 : vector<8x128xf32>
    %14 = arith.mulf %8, %13 : vector<8x128xf32>
    %15 = vector.extract_strided_slice %5 {offsets = [0, 128], sizes = [8, 128], strides = [1, 1]} : vector<8x256xf32> to vector<8x128xf32>
    %16 = arith.truncf %14 : vector<8x128xf32> to vector<8x128xbf16>
    %c0_8 = arith.constant 0 : index
    %c0_9 = arith.constant 0 : index
    %17 = vector.load %arg4[%c0_8, %c0_9] : memref<128x128xbf16, #tpu.memory_space<vmem>>, vector<128x128xbf16>
    %cst_10 = arith.constant dense<0.000000e+00> : vector<8x128xf32>
    %18 = tpu.matmul %16, %17, %cst_10 {dimension_numbers = #tpu.dot_dimension_numbers<[1], [0], [0], [1], [0, 0, 1, 1], [], []>} : vector<8x128xbf16>, vector<128x128xbf16>, vector<8x128xf32> -> vector<8x128xf32>
    %c0_11 = arith.constant 0 : index
    %c0_12 = arith.constant 0 : index
    %19 = vector.load %arg5[%c0_11, %c0_12] : memref<1x128xf32, #tpu.memory_space<vmem>>, vector<1x128xf32>
    %20 = vector.broadcast %19 : vector<1x128xf32> to vector<8x128xf32>
    %21 = arith.addf %18, %20 : vector<8x128xf32>
    %cst_13 = arith.constant 5.000000e-01 : f32
    %22 = vector.broadcast %cst_13 : f32 to vector<8x128xf32>
    %23 = arith.mulf %22, %21 : vector<8x128xf32>
    %cst_14 = arith.constant 0.707106769 : f32
    %24 = vector.broadcast %cst_14 : f32 to vector<8x128xf32>
    %25 = arith.mulf %21, %24 : vector<8x128xf32>
    %26 = math.erf %25 : vector<8x128xf32>
    %cst_15 = arith.constant 1.000000e+00 : f32
    %27 = vector.broadcast %cst_15 : f32 to vector<8x128xf32>
    %28 = arith.addf %27, %26 : vector<8x128xf32>
    %29 = arith.mulf %23, %28 : vector<8x128xf32>
    %30 = arith.addf %29, %15 : vector<8x128xf32>
    %31 = arith.truncf %30 : vector<8x128xf32> to vector<8x128xbf16>
    %c0_16 = arith.constant 0 : index
    %c0_17 = arith.constant 0 : index
    %32 = vector.load %arg6[%c0_16, %c0_17] : memref<8x128xbf16, #tpu.memory_space<vmem>>, vector<8x128xbf16>
    tpu.vector_store %arg6[%c0_16, %c0_17], %31 {strides = array<i32>} : memref<8x128xbf16, #tpu.memory_space<vmem>>, vector<8x128xbf16>,
    return
  }
  func.func @transform_0(%arg0: i32) -> (i32, i32) {
    %c0_i32 = arith.constant 0 : i32
    %c0_i32_0 = arith.constant 0 : i32
    return %arg0, %c0_i32 : i32, i32
  }
  func.func @transform_1(%arg0: i32) -> (i32, i32) {
    %c0_i32 = arith.constant 0 : i32
    %c0_i32_0 = arith.constant 0 : i32
    %c0_i32_1 = arith.constant 0 : i32
    return %c0_i32, %c0_i32_0 : i32, i32
  }
  func.func @transform_2(%arg0: i32) -> (i32, i32) {
    %c0_i32 = arith.constant 0 : i32
    %c0_i32_0 = arith.constant 0 : i32
    %c0_i32_1 = arith.constant 0 : i32
    return %c0_i32, %c0_i32_0 : i32, i32
  }
  func.func @transform_3(%arg0: i32) -> (i32, i32) {
    %c0_i32 = arith.constant 0 : i32
    %c0_i32_0 = arith.constant 0 : i32
    %c0_i32_1 = arith.constant 0 : i32
    return %c0_i32, %c0_i32_0 : i32, i32
  }
  func.func @transform_4(%arg0: i32) -> (i32, i32) {
    %c0_i32 = arith.constant 0 : i32
    %c0_i32_0 = arith.constant 0 : i32
    %c0_i32_1 = arith.constant 0 : i32
    return %c0_i32, %c0_i32_0 : i32, i32
  }
  func.func @transform_5(%arg0: i32) -> (i32, i32) {
    %c0_i32 = arith.constant 0 : i32
    %c0_i32_0 = arith.constant 0 : i32
    return %arg0, %c0_i32 : i32, i32
  }
}

</mosaic_0001>

<llo_original>
// kernel: tpu_custom_call.1
$region0: #{tpu_custom_call.1}
  #allocation0 [shape = 'u32[]', space=smem, size = 0x4, offset = 0x4, fixed_abs, tag = 'smem constant byte address 0x4 - core index']
  #allocation1 [shape = 'u32[72,128]{1,0:T(1,128)}', space=vmem, size = 0x9000, scoped, tag = 'internal scratch']
  %s0 = inlined_call_operand.hbm [shape: bf16[8,128], index: 0, kind: input, shape index: {}]
  %s1 = inlined_call_operand.hbm [shape: bf16[128,256], index: 1, kind: input, shape index: {}]
  %s2 = inlined_call_operand.hbm [shape: f32[1,256], index: 2, kind: input, shape index: {}]
  %s3 = inlined_call_operand.hbm [shape: bf16[128,128], index: 3, kind: input, shape index: {}]
  %s4 = inlined_call_operand.vmem [shape: f32[1,128], index: 4, kind: input, shape index: {}]
  %s5 = inlined_call_operand.hbm [shape: bf16[8,128], index: 5, kind: output, shape index: {}]
  %s6 = sld [smem:[#allocation0]]
  $region46: #{tpu_custom_call.1} parent=0
    _
  %s8 = ssub.s32 1, %s6
  %s9 = scalar_select 0, %s8, %s6
  $region1: #{tpu_custom_call.1} parent=0
    #allocation2 [shape = 'u8[2048]{0}', space=vmem, size = 0x800, scoped, tag = 'input window, operand 0, single buffered']
    #allocation3 [shape = 's32[1]{0}', space=sflag, size = 0x4, scoped, tag = 'scoped memory for tpu_custom_call.1']
    #allocation4 [shape = 's32[1]{0}', space=sflag, size = 0x4, scoped, tag = 'scoped memory for tpu_custom_call.1']
    #allocation5 [shape = 'u8[65536]{0}', space=vmem, size = 0x10000, scoped, tag = 'input window, operand 1, single buffered']
    #allocation6 [shape = 's32[1]{0}', space=sflag, size = 0x4, scoped, tag = 'scoped memory for tpu_custom_call.1']
    #allocation7 [shape = 'u8[1024]{0}', space=vmem, size = 0x400, scoped, tag = 'input window, operand 2, single buffered']
    #allocation8 [shape = 'u8[32768]{0}', space=vmem, size = 0x8000, scoped, tag = 'input window, operand 3, single buffered']
    #allocation9 [shape = 's32[1]{0}', space=sflag, size = 0x4, scoped, tag = 'scoped memory for tpu_custom_call.1']
    #allocation10 [shape = 'u8[2048]{0}', space=vmem, size = 0x800, scoped, tag = 'output window, operand 0, single buffered']
    %10 = vsyncpa [#allocation3], 0
    %11 = vsyncpa [#allocation6], 0
    %12 = vsyncpa [#allocation9], 0
    %13 = vsyncpa [#allocation4], 0
    // Predicated region
    $region2: #{tpu_custom_call.1} parent=1 // pred_check
      _
    $region3: #{tpu_custom_call.1} parent=1 // pred_check_branch
      %15 = sbr.rel (0) target = $region5
    $region4: #{tpu_custom_call.1} parent=1 // pred_region
      %17 = vsyncadd [#allocation3], 0
      %s19 = sshll.u32 %s0, 4
      %s20 = int_to_ptr.hbm [resolvable:$true] %s19
      %s21 = sshll.u32 [#allocation2], 4
      %s22 = int_to_ptr.vmem [resolvable:$true] %s21
      %24 = dma.hbm_to_vmem [thread:$0]  %s20, 64, %s22, [#allocation3]
    $region5: #{tpu_custom_call.1} parent=1 // pred_fallthru
      _
    // Predicated region
    $region6: #{tpu_custom_call.1} parent=1 // pred_check
      _
    $region7: #{tpu_custom_call.1} parent=1 // pred_check_branch
      %26 = sbr.rel (0) target = $region9
    $region8: #{tpu_custom_call.1} parent=1 // pred_region
      %28 = vsyncadd [#allocation6], 0
      %s29 = sshll.u32 %s1, 4
      %s30 = int_to_ptr.hbm [resolvable:$true] %s29
      %s31 = sshll.u32 [#allocation5], 4
      %s32 = int_to_ptr.vmem [resolvable:$true] %s31
      %37 = dma.hbm_to_vmem [thread:$0]  %s30, 2048, %s32, [#allocation6], 128, 128, 8
    $region9: #{tpu_custom_call.1} parent=1 // pred_fallthru
      _
    // Predicated region
    $region10: #{tpu_custom_call.1} parent=1 // pred_check
      _
    $region11: #{tpu_custom_call.1} parent=1 // pred_check_branch
      %39 = sbr.rel (0) target = $region13
    $region12: #{tpu_custom_call.1} parent=1 // pred_region
      %41 = vsyncadd [#allocation6], 0
      %s43 = sshll.u32 %s2, 4
      %s44 = int_to_ptr.hbm [resolvable:$true] %s43
      %s45 = sshll.u32 [#allocation7], 4
      %s46 = int_to_ptr.vmem [resolvable:$true] %s45
      %48 = dma.hbm_to_vmem [thread:$0]  %s44, 32, %s46, [#allocation6]
    $region13: #{tpu_custom_call.1} parent=1 // pred_fallthru
      _
    // Predicated region
    $region14: #{tpu_custom_call.1} parent=1 // pred_check
      _
    $region15: #{tpu_custom_call.1} parent=1 // pred_check_branch
      %50 = sbr.rel (0) target = $region17
    $region16: #{tpu_custom_call.1} parent=1 // pred_region
      %52 = vsyncadd [#allocation9], 0
      %s53 = sshll.u32 %s3, 4
      %s54 = int_to_ptr.hbm [resolvable:$true] %s53
      %s55 = sshll.u32 [#allocation8], 4
      %s56 = int_to_ptr.vmem [resolvable:$true] %s55
      %61 = dma.hbm_to_vmem [thread:$0]  %s54, 1024, %s56, [#allocation9], 64, 64, 4
    $region17: #{tpu_custom_call.1} parent=1 // pred_fallthru
      _
    // Predicated region
    $region18: #{tpu_custom_call.1} parent=1 // pred_check
      _
    $region19: #{tpu_custom_call.1} parent=1 // pred_check_branch
      %63 = sbr.rel (0) target = $region21
    $region20: #{tpu_custom_call.1} parent=1 // pred_region
      _
    $region21: #{tpu_custom_call.1} parent=1 // pred_fallthru
      _
    // Predicated region
    $region22: #{tpu_custom_call.1} parent=1 // pred_check
      _
    $region23: #{tpu_custom_call.1} parent=1 // pred_check_branch
      %65 = sbr.rel (0) target = $region25
    $region24: #{tpu_custom_call.1} parent=1 // pred_region
      %67 = dma.done [#allocation3], 64
    $region25: #{tpu_custom_call.1} parent=1 // pred_fallthru
      _
    // Predicated region
    $region26: #{tpu_custom_call.1} parent=1 // pred_check
      _
    $region27: #{tpu_custom_call.1} parent=1 // pred_check_branch
      %69 = sbr.rel (0) target = $region29
    $region28: #{tpu_custom_call.1} parent=1 // pred_region
      %71 = dma.done [#allocation6], 2048
    $region29: #{tpu_custom_call.1} parent=1 // pred_fallthru
      _
    // Predicated region
    $region30: #{tpu_custom_call.1} parent=1 // pred_check
      _
    $region31: #{tpu_custom_call.1} parent=1 // pred_check_branch
      %73 = sbr.rel (0) target = $region33
    $region32: #{tpu_custom_call.1} parent=1 // pred_region
      %75 = dma.done [#allocation6], 32
    $region33: #{tpu_custom_call.1} parent=1 // pred_fallthru
      _
    // Predicated region
    $region34: #{tpu_custom_call.1} parent=1 // pred_check
      _
    $region35: #{tpu_custom_call.1} parent=1 // pred_check_branch
      %77 = sbr.rel (0) target = $region37
    $region36: #{tpu_custom_call.1} parent=1 // pred_region
      %79 = dma.done [#allocation9], 1024
    $region37: #{tpu_custom_call.1} parent=1 // pred_fallthru
      _
    %v80 = vld [vmem:[#allocation2] sm:$0xf]
    %v81 = vld [vmem:[#allocation5] sm:$0xff]
    %v82 = vld [vmem:[#allocation5 + $0x8] sm:$0xff]
    %v83 = vld [vmem:[#allocation5 + $0x10] sm:$0xff]
    %v84 = vld [vmem:[#allocation5 + $0x18] sm:$0xff]
    %v85 = vld [vmem:[#allocation5 + $0x20] sm:$0xff]
    %v86 = vld [vmem:[#allocation5 + $0x28] sm:$0xff]
    %v87 = vld [vmem:[#allocation5 + $0x30] sm:$0xff]
    %v88 = vld [vmem:[#allocation5 + $0x38] sm:$0xff]
    %v89 = vld [vmem:[#allocation5 + $0x40] sm:$0xff]
    %v90 = vld [vmem:[#allocation5 + $0x48] sm:$0xff]
    %v91 = vld [vmem:[#allocation5 + $0x50] sm:$0xff]
    %v92 = vld [vmem:[#allocation5 + $0x58] sm:$0xff]
    %v93 = vld [vmem:[#allocation5 + $0x60] sm:$0xff]
    %v94 = vld [vmem:[#allocation5 + $0x68] sm:$0xff]
    %v95 = vld [vmem:[#allocation5 + $0x70] sm:$0xff]
    %v96 = vld [vmem:[#allocation5 + $0x78] sm:$0xff]
    %v97 = vld [vmem:[#allocation7] sm:$0x3]
    %v99 = vperm.slane %v97, 0
    %v100 = vperm.slane %v97, 1
    %v119 = vunpack.c.l.b16 %v81
    %v120 = vunpack.c.h.b16 %v81
    %v121 = vunpack.c.l.b16 %v82
    %v122 = vunpack.c.h.b16 %v82
    %v123 = vunpack.c.l.b16 %v83
    %v124 = vunpack.c.h.b16 %v83
    %v125 = vunpack.c.l.b16 %v84
    %v126 = vunpack.c.h.b16 %v84
    %v127 = vunpack.c.l.b16 %v85
    %v128 = vunpack.c.h.b16 %v85
    %v129 = vunpack.c.l.b16 %v86
    %v130 = vunpack.c.h.b16 %v86
    %v131 = vunpack.c.l.b16 %v87
    %v132 = vunpack.c.h.b16 %v87
    %v133 = vunpack.c.l.b16 %v88
    %v134 = vunpack.c.h.b16 %v88
    %v135 = vunpack.c.l.b16 %v89
    %v136 = vunpack.c.h.b16 %v89
    %v137 = vunpack.c.l.b16 %v90
    %v138 = vunpack.c.h.b16 %v90
    %v139 = vunpack.c.l.b16 %v91
    %v140 = vunpack.c.h.b16 %v91
    %v141 = vunpack.c.l.b16 %v92
    %v142 = vunpack.c.h.b16 %v92
    %v143 = vunpack.c.l.b16 %v93
    %v144 = vunpack.c.h.b16 %v93
    %v145 = vunpack.c.l.b16 %v94
    %v146 = vunpack.c.h.b16 %v94
    %v147 = vunpack.c.l.b16 %v95
    %v148 = vunpack.c.h.b16 %v95
    %v149 = vunpack.c.l.b16 %v96
    %v150 = vunpack.c.h.b16 %v96
    %v151 = vpack.c.b16 %v121, %v119
    %v152 = vpack.c.b16 %v122, %v120
    %v153 = vpack.c.b16 %v125, %v123
    %v154 = vpack.c.b16 %v126, %v124
    %v155 = vpack.c.b16 %v129, %v127
    %v156 = vpack.c.b16 %v130, %v128
    %v157 = vpack.c.b16 %v133, %v131
    %v158 = vpack.c.b16 %v134, %v132
    %v159 = vpack.c.b16 %v137, %v135
    %v160 = vpack.c.b16 %v138, %v136
    %v161 = vpack.c.b16 %v141, %v139
    %v162 = vpack.c.b16 %v142, %v140
    %v163 = vpack.c.b16 %v145, %v143
    %v164 = vpack.c.b16 %v146, %v144
    %v165 = vpack.c.b16 %v149, %v147
    %v166 = vpack.c.b16 %v150, %v148
    %183 = vmatpush.bf16.msra.mxu0 %v165
    %184 = vmatpush.bf16.msra.mxu0 %v163
    %185 = vmatpush.bf16.msra.mxu0 %v161
    %186 = vmatpush.bf16.msra.mxu0 %v159
    %187 = vmatpush.bf16.msra.mxu0 %v157
    %188 = vmatpush.bf16.msra.mxu0 %v155
    %189 = vmatpush.bf16.msra.mxu0 %v153
    %190 = vmatpush.bf16.msra.mxu0 %v151
    %191 = vmatmul.bf16.gmra.mxu0 %v80
    %v192 = vpop.f32.mrf.mxu0
    %v193 = vadd.f32 %v99, %v192
    %v194 = vpop.f32.mrf.mxu0
    %195 = vdwg.mxu0
    %196 = vmatpush.bf16.msra.mxu0 %v166
    %197 = vmatpush.bf16.msra.mxu0 %v164
    %198 = vmatpush.bf16.msra.mxu0 %v162
    %199 = vmatpush.bf16.msra.mxu0 %v160
    %200 = vmatpush.bf16.msra.mxu0 %v158
    %201 = vmatpush.bf16.msra.mxu0 %v156
    %202 = vmatpush.bf16.msra.mxu0 %v154
    %203 = vmatpush.bf16.msra.mxu0 %v152
    %204 = vmatmul.bf16.gmra.mxu0 %v80
    %v205 = vpop.f32.mrf.mxu0
    %v206 = vadd.f32 %v100, %v205
    %v207 = vpop.f32.mrf.mxu0
    %208 = vdwg.mxu0
    %v209 = vmul.f32 %v193, 0.5
    %v210 = vmul.f32 %v193, 0.70710677
    %v211 = vmul.f32 %v210, %v210
    %v212 = vmin.f32 16.0, %v211
    %v213 = vmul.f32 %v212, 2.1237322e-06
    %v214 = vadd.f32 %v213, 0.00028619796
    %v215 = vmul.f32 %v212, %v214
    %v216 = vadd.f32 %v215, 0.0036580483
    %v217 = vmul.f32 %v212, %v216
    %v218 = vadd.f32 %v217, 0.05243302
    %v219 = vmul.f32 %v212, %v218
    %v220 = vadd.f32 %v219, 0.18741608
    %v221 = vmul.f32 %v212, %v220
    %v222 = vadd.f32 %v221, 1.1283791
    %v223 = vmul.f32 %v210, %v222
    %v224 = vmul.f32 %v212, 3.8918573e-05
    %v225 = vadd.f32 %v224, 0.001143296
    %v226 = vmul.f32 %v212, %v225
    %v227 = vadd.f32 %v226, 0.014752088
    %v228 = vmul.f32 %v212, %v227
    %v229 = vadd.f32 %v228, 0.112945676
    %v230 = vmul.f32 %v212, %v229
    %v231 = vadd.f32 %v230, 0.4994258
    %v232 = vmul.f32 %v212, %v231
    %v233 = vadd.f32 %v232, 1.0
    %v234 = vrcp.pop %v233
    %v235 = vmul.f32 %v233, %v234
    %v236 = vsub.f32 1.0, %v235
    %v237 = vmul.f32 %v234, %v236
    %v238 = vadd.f32 %v234, %v237
    %vm239 = vweird.f32 %v233
    %vm240 = vweird.f32 %v234
    %vm241 = vmor %vm239, %vm240
    %v242 = vsel %vm241, %v234, %v238
    %v243 = vand.u32 2147483647, %v233
    %vm244 = vcmp.eq.f32.partialorder %v243, 8.507059e+37
    %v245 = vand.u32 %v233, 2147483648
    %v246 = vor.u32 1.1754944e-38, %v245
    %v247 = vsel %vm244, %v246, %v242
    %v248 = vmul.f32 %v223, %v247
    %v249 = vmin.f32 %v248, 1.0
    %v250 = vmax.f32 %v249, -1.0
    %v251 = vadd.f32 %v250, 1.0
    %v252 = vmul.f32 %v209, %v251
    %v253 = vpack.c.bf16 %v252, %v252
    %v254 = vld [vmem:[#allocation8] sm:$0xf]
    %v255 = vld [vmem:[#allocation8 + $0x4] sm:$0xf]
    %v256 = vld [vmem:[#allocation8 + $0x8] sm:$0xf]
    %v257 = vld [vmem:[#allocation8 + $0xc] sm:$0xf]
    %v258 = vld [vmem:[#allocation8 + $0x10] sm:$0xf]
    %v259 = vld [vmem:[#allocation8 + $0x14] sm:$0xf]
    %v260 = vld [vmem:[#allocation8 + $0x18] sm:$0xf]
    %v261 = vld [vmem:[#allocation8 + $0x1c] sm:$0xf]
    %v262 = vld [vmem:[#allocation8 + $0x20] sm:$0xf]
    %v263 = vld [vmem:[#allocation8 + $0x24] sm:$0xf]
    %v264 = vld [vmem:[#allocation8 + $0x28] sm:$0xf]
    %v265 = vld [vmem:[#allocation8 + $0x2c] sm:$0xf]
    %v266 = vld [vmem:[#allocation8 + $0x30] sm:$0xf]
    %v267 = vld [vmem:[#allocation8 + $0x34] sm:$0xf]
    %v268 = vld [vmem:[#allocation8 + $0x38] sm:$0xf]
    %v269 = vld [vmem:[#allocation8 + $0x3c] sm:$0xf]
    %v270 = vld [vmem:[%s4] sm:$0x1]
    %v272 = vperm.slane %v270, 0
    %v290 = vunpack.c.l.b16 %v254
    %v291 = vunpack.c.l.b16 %v255
    %v292 = vunpack.c.l.b16 %v256
    %v293 = vunpack.c.l.b16 %v257
    %v294 = vunpack.c.l.b16 %v258
    %v295 = vunpack.c.l.b16 %v259
    %v296 = vunpack.c.l.b16 %v260
    %v297 = vunpack.c.l.b16 %v261
    %v298 = vunpack.c.l.b16 %v262
    %v299 = vunpack.c.l.b16 %v263
    %v300 = vunpack.c.l.b16 %v264
    %v301 = vunpack.c.l.b16 %v265
    %v302 = vunpack.c.l.b16 %v266
    %v303 = vunpack.c.l.b16 %v267
    %v304 = vunpack.c.l.b16 %v268
    %v305 = vunpack.c.l.b16 %v269
    %v306 = vpack.c.b16 %v291, %v290
    %v307 = vpack.c.b16 %v293, %v292
    %v308 = vpack.c.b16 %v295, %v294
    %v309 = vpack.c.b16 %v297, %v296
    %v310 = vpack.c.b16 %v299, %v298
    %v311 = vpack.c.b16 %v301, %v300
    %v312 = vpack.c.b16 %v303, %v302
    %v313 = vpack.c.b16 %v305, %v304
    %322 = vmatpush.bf16.msra.mxu0 %v313
    %323 = vmatpush.bf16.msra.mxu0 %v312
    %324 = vmatpush.bf16.msra.mxu0 %v311
    %325 = vmatpush.bf16.msra.mxu0 %v310
    %326 = vmatpush.bf16.msra.mxu0 %v309
    %327 = vmatpush.bf16.msra.mxu0 %v308
    %328 = vmatpush.bf16.msra.mxu0 %v307
    %329 = vmatpush.bf16.msra.mxu0 %v306
    %330 = vmatmul.bf16.gmra.mxu0 %v253
    %v331 = vpop.f32.mrf.mxu0
    %v332 = vadd.f32 %v272, %v331
    %v333 = vpop.f32.mrf.mxu0
    %334 = vdwg.mxu0
    %v335 = vmul.f32 %v332, 0.5
    %v336 = vmul.f32 %v332, 0.70710677
    %v337 = vmul.f32 %v336, %v336
    %v338 = vmin.f32 16.0, %v337
    %v339 = vmul.f32 %v338, 2.1237322e-06
    %v340 = vadd.f32 %v339, 0.00028619796
    %v341 = vmul.f32 %v338, %v340
    %v342 = vadd.f32 %v341, 0.0036580483
    %v343 = vmul.f32 %v338, %v342
    %v344 = vadd.f32 %v343, 0.05243302
    %v345 = vmul.f32 %v338, %v344
    %v346 = vadd.f32 %v345, 0.18741608
    %v347 = vmul.f32 %v338, %v346
    %v348 = vadd.f32 %v347, 1.1283791
    %v349 = vmul.f32 %v336, %v348
    %v350 = vmul.f32 %v338, 3.8918573e-05
    %v351 = vadd.f32 %v350, 0.001143296
    %v352 = vmul.f32 %v338, %v351
    %v353 = vadd.f32 %v352, 0.014752088
    %v354 = vmul.f32 %v338, %v353
    %v355 = vadd.f32 %v354, 0.112945676
    %v356 = vmul.f32 %v338, %v355
    %v357 = vadd.f32 %v356, 0.4994258
    %v358 = vmul.f32 %v338, %v357
    %v359 = vadd.f32 %v358, 1.0
    %v360 = vrcp.pop %v359
    %v361 = vmul.f32 %v359, %v360
    %v362 = vsub.f32 1.0, %v361
    %v363 = vmul.f32 %v360, %v362
    %v364 = vadd.f32 %v360, %v363
    %vm365 = vweird.f32 %v359
    %vm366 = vweird.f32 %v360
    %vm367 = vmor %vm365, %vm366
    %v368 = vsel %vm367, %v360, %v364
    %v369 = vand.u32 2147483647, %v359
    %vm370 = vcmp.eq.f32.partialorder %v369, 8.507059e+37
    %v371 = vand.u32 %v359, 2147483648
    %v372 = vor.u32 1.1754944e-38, %v371
    %v373 = vsel %vm370, %v372, %v368
    %v374 = vmul.f32 %v349, %v373
    %v375 = vmin.f32 %v374, 1.0
    %v376 = vmax.f32 %v375, -1.0
    %v377 = vadd.f32 %v376, 1.0
    %v378 = vmul.f32 %v335, %v377
    %v379 = vadd.f32 %v378, %v206
    %v380 = vpack.c.bf16 %v379, %v379
    %381 = vst [vmem:[#allocation10] sm:$0xf] %v380
    // Predicated region
    $region38: #{tpu_custom_call.1} parent=1 // pred_check
      _
    $region39: #{tpu_custom_call.1} parent=1 // pred_check_branch
      %383 = sbr.rel (0) target = $region41
    $region40: #{tpu_custom_call.1} parent=1 // pred_region
      %385 = vsyncadd [#allocation4], 0
      %s387 = sshll.u32 [#allocation10], 4
      %s388 = int_to_ptr.vmem [resolvable:$true] %s387
      %s389 = sshll.u32 %s5, 4
      %s390 = int_to_ptr.hbm [resolvable:$true] %s389
      %392 = dma.vmem_to_hbm [thread:$0]  %s388, 64, %s390, [#allocation4]
    $region41: #{tpu_custom_call.1} parent=1 // pred_fallthru
      _
    // Predicated region
    $region42: #{tpu_custom_call.1} parent=1 // pred_check
      _
    $region43: #{tpu_custom_call.1} parent=1 // pred_check_branch
      %394 = sbr.rel (0) target = $region45
    $region44: #{tpu_custom_call.1} parent=1 // pred_region
      %396 = dma.done [#allocation4], 64
    $region45: #{tpu_custom_call.1} parent=1 // pred_fallthru
      _
    %397 = vsyncpa [#allocation3], 1
    %398 = vsyncpa [#allocation6], 1
    %399 = vsyncpa [#allocation9], 1
    %400 = vsyncpa [#allocation4], 1

// kernel: tpu_custom_call.1
$region0: #{tpu_custom_call.1}
  #allocation0 [shape = 'u32[]', space=smem, size = 0x4, offset = 0x4, fixed_abs, tag = 'smem constant byte address 0x4 - core index']
  #allocation1 [shape = 'u32[72,128]{1,0:T(1,128)}', space=vmem, size = 0x9000, scoped, tag = 'internal scratch']
  %s0 = inlined_call_operand.hbm [shape: bf16[8,128], index: 0, kind: input, shape index: {}]
  %s1 = inlined_call_operand.hbm [shape: bf16[128,256], index: 1, kind: input, shape index: {}]
  %s2 = inlined_call_operand.hbm [shape: f32[1,256], index: 2, kind: input, shape index: {}]
  %s3 = inlined_call_operand.hbm [shape: bf16[128,128], index: 3, kind: input, shape index: {}]
  %s4 = inlined_call_operand.vmem [shape: f32[1,128], index: 4, kind: input, shape index: {}]
  %s5 = inlined_call_operand.hbm [shape: bf16[8,128], index: 5, kind: output, shape index: {}]
  %s6 = sld [smem:[#allocation0]]
  $region46: #{tpu_custom_call.1} parent=0
    _
  %s8 = ssub.s32 1, %s6
  %s9 = scalar_select 0, %s8, %s6
  $region1: #{tpu_custom_call.1} parent=0
    #allocation2 [shape = 'u8[2048]{0}', space=vmem, size = 0x800, scoped, tag = 'input window, operand 0, single buffered']
    #allocation3 [shape = 's32[1]{0}', space=sflag, size = 0x4, scoped, tag = 'scoped memory for tpu_custom_call.1']
    #allocation4 [shape = 's32[1]{0}', space=sflag, size = 0x4, scoped, tag = 'scoped memory for tpu_custom_call.1']
    #allocation5 [shape = 'u8[65536]{0}', space=vmem, size = 0x10000, scoped, tag = 'input window, operand 1, single buffered']
    #allocation6 [shape = 's32[1]{0}', space=sflag, size = 0x4, scoped, tag = 'scoped memory for tpu_custom_call.1']
    #allocation7 [shape = 'u8[1024]{0}', space=vmem, size = 0x400, scoped, tag = 'input window, operand 2, single buffered']
    #allocation8 [shape = 'u8[32768]{0}', space=vmem, size = 0x8000, scoped, tag = 'input window, operand 3, single buffered']
    #allocation9 [shape = 's32[1]{0}', space=sflag, size = 0x4, scoped, tag = 'scoped memory for tpu_custom_call.1']
    #allocation10 [shape = 'u8[2048]{0}', space=vmem, size = 0x800, scoped, tag = 'output window, operand 0, single buffered']
    %10 = vsyncpa [#allocation3], 0
    %11 = vsyncpa [#allocation6], 0
    %12 = vsyncpa [#allocation9], 0
    %13 = vsyncpa [#allocation4], 0
    // Predicated region
    $region2: #{tpu_custom_call.1} parent=1 // pred_check
      _
    $region3: #{tpu_custom_call.1} parent=1 // pred_check_branch
      %15 = sbr.rel (0) target = $region5
    $region4: #{tpu_custom_call.1} parent=1 // pred_region
      %17 = vsyncadd [#allocation3], 0
      %s19 = sshll.u32 %s0, 4
      %s20 = int_to_ptr.hbm [resolvable:$true] %s19
      %s21 = sshll.u32 [#allocation2], 4
      %s22 = int_to_ptr.vmem [resolvable:$true] %s21
      %24 = dma.hbm_to_vmem [thread:$0]  %s20, 64, %s22, [#allocation3]
    $region5: #{tpu_custom_call.1} parent=1 // pred_fallthru
      _
    // Predicated region
    $region6: #{tpu_custom_call.1} parent=1 // pred_check
      _
    $region7: #{tpu_custom_call.1} parent=1 // pred_check_branch
      %26 = sbr.rel (0) target = $region9
    $region8: #{tpu_custom_call.1} parent=1 // pred_region
      %28 = vsyncadd [#allocation6], 0
      %s29 = sshll.u32 %s1, 4
      %s30 = int_to_ptr.hbm [resolvable:$true] %s29
      %s31 = sshll.u32 [#allocation5], 4
      %s32 = int_to_ptr.vmem [resolvable:$true] %s31
      %37 = dma.hbm_to_vmem [thread:$0]  %s30, 2048, %s32, [#allocation6], 128, 128, 8
    $region9: #{tpu_custom_call.1} parent=1 // pred_fallthru
      _
    // Predicated region
    $region10: #{tpu_custom_call.1} parent=1 // pred_check
      _
    $region11: #{tpu_custom_call.1} parent=1 // pred_check_branch
      %39 = sbr.rel (0) target = $region13
    $region12: #{tpu_custom_call.1} parent=1 // pred_region
      %41 = vsyncadd [#allocation6], 0
      %s43 = sshll.u32 %s2, 4
      %s44 = int_to_ptr.hbm [resolvable:$true] %s43
      %s45 = sshll.u32 [#allocation7], 4
      %s46 = int_to_ptr.vmem [resolvable:$true] %s45
      %48 = dma.hbm_to_vmem [thread:$0]  %s44, 32, %s46, [#allocation6]
    $region13: #{tpu_custom_call.1} parent=1 // pred_fallthru
      _
    // Predicated region
    $region14: #{tpu_custom_call.1} parent=1 // pred_check
      _
    $region15: #{tpu_custom_call.1} parent=1 // pred_check_branch
      %50 = sbr.rel (0) target = $region17
    $region16: #{tpu_custom_call.1} parent=1 // pred_region
      %52 = vsyncadd [#allocation9], 0
      %s53 = sshll.u32 %s3, 4
      %s54 = int_to_ptr.hbm [resolvable:$true] %s53
      %s55 = sshll.u32 [#allocation8], 4
      %s56 = int_to_ptr.vmem [resolvable:$true] %s55
      %61 = dma.hbm_to_vmem [thread:$0]  %s54, 1024, %s56, [#allocation9], 64, 64, 4
    $region17: #{tpu_custom_call.1} parent=1 // pred_fallthru
      _
    // Predicated region
    $region18: #{tpu_custom_call.1} parent=1 // pred_check
      _
    $region19: #{tpu_custom_call.1} parent=1 // pred_check_branch
      %63 = sbr.rel (0) target = $region21
    $region20: #{tpu_custom_call.1} parent=1 // pred_region
      _
    $region21: #{tpu_custom_call.1} parent=1 // pred_fallthru
      _
    // Predicated region
    $region22: #{tpu_custom_call.1} parent=1 // pred_check
      _
    $region23: #{tpu_custom_call.1} parent=1 // pred_check_branch
      %65 = sbr.rel (0) target = $region25
    $region24: #{tpu_custom_call.1} parent=1 // pred_region
      %67 = dma.done [#allocation3], 64
    $region25: #{tpu_custom_call.1} parent=1 // pred_fallthru
      _
    // Predicated region
    $region26: #{tpu_custom_call.1} parent=1 // pred_check
      _
    $region27: #{tpu_custom_call.1} parent=1 // pred_check_branch
      %69 = sbr.rel (0) target = $region29
    $region28: #{tpu_custom_call.1} parent=1 // pred_region
      %71 = dma.done [#allocation6], 2048
    $region29: #{tpu_custom_call.1} parent=1 // pred_fallthru
      _
    // Predicated region
    $region30: #{tpu_custom_call.1} parent=1 // pred_check
      _
    $region31: #{tpu_custom_call.1} parent=1 // pred_check_branch
      %73 = sbr.rel (0) target = $region33
    $region32: #{tpu_custom_call.1} parent=1 // pred_region
      %75 = dma.done [#allocation6], 32
    $region33: #{tpu_custom_call.1} parent=1 // pred_fallthru
      _
    // Predicated region
    $region34: #{tpu_custom_call.1} parent=1 // pred_check
      _
    $region35: #{tpu_custom_call.1} parent=1 // pred_check_branch
      %77 = sbr.rel (0) target = $region37
    $region36: #{tpu_custom_call.1} parent=1 // pred_region
      %79 = dma.done [#allocation9], 1024
    $region37: #{tpu_custom_call.1} parent=1 // pred_fallthru
      _
    %v80 = vld [vmem:[#allocation2] sm:$0xf]
    %v81 = vld [vmem:[#allocation5] sm:$0xff]
    %v82 = vld [vmem:[#allocation5 + $0x8] sm:$0xff]
    %v83 = vld [vmem:[#allocation5 + $0x10] sm:$0xff]
    %v84 = vld [vmem:[#allocation5 + $0x18] sm:$0xff]
    %v85 = vld [vmem:[#allocation5 + $0x20] sm:$0xff]
    %v86 = vld [vmem:[#allocation5 + $0x28] sm:$0xff]
    %v87 = vld [vmem:[#allocation5 + $0x30] sm:$0xff]
    %v88 = vld [vmem:[#allocation5 + $0x38] sm:$0xff]
    %v89 = vld [vmem:[#allocation5 + $0x40] sm:$0xff]
    %v90 = vld [vmem:[#allocation5 + $0x48] sm:$0xff]
    %v91 = vld [vmem:[#allocation5 + $0x50] sm:$0xff]
    %v92 = vld [vmem:[#allocation5 + $0x58] sm:$0xff]
    %v93 = vld [vmem:[#allocation5 + $0x60] sm:$0xff]
    %v94 = vld [vmem:[#allocation5 + $0x68] sm:$0xff]
    %v95 = vld [vmem:[#allocation5 + $0x70] sm:$0xff]
    %v96 = vld [vmem:[#allocation5 + $0x78] sm:$0xff]
    %v97 = vld [vmem:[#allocation7] sm:$0x3]
    %v99 = vperm.slane %v97, 0
    %v100 = vperm.slane %v97, 1
    %v119 = vunpack.c.l.b16 %v81
    %v120 = vunpack.c.h.b16 %v81
    %v121 = vunpack.c.l.b16 %v82
    %v122 = vunpack.c.h.b16 %v82
    %v123 = vunpack.c.l.b16 %v83
    %v124 = vunpack.c.h.b16 %v83
    %v125 = vunpack.c.l.b16 %v84
    %v126 = vunpack.c.h.b16 %v84
    %v127 = vunpack.c.l.b16 %v85
    %v128 = vunpack.c.h.b16 %v85
    %v129 = vunpack.c.l.b16 %v86
    %v130 = vunpack.c.h.b16 %v86
    %v131 = vunpack.c.l.b16 %v87
    %v132 = vunpack.c.h.b16 %v87
    %v133 = vunpack.c.l.b16 %v88
    %v134 = vunpack.c.h.b16 %v88
    %v135 = vunpack.c.l.b16 %v89
    %v136 = vunpack.c.h.b16 %v89
    %v137 = vunpack.c.l.b16 %v90
    %v138 = vunpack.c.h.b16 %v90
    %v139 = vunpack.c.l.b16 %v91
    %v140 = vunpack.c.h.b16 %v91
    %v141 = vunpack.c.l.b16 %v92
    %v142 = vunpack.c.h.b16 %v92
    %v143 = vunpack.c.l.b16 %v93
    %v144 = vunpack.c.h.b16 %v93
    %v145 = vunpack.c.l.b16 %v94
    %v146 = vunpack.c.h.b16 %v94
    %v147 = vunpack.c.l.b16 %v95
    %v148 = vunpack.c.h.b16 %v95
    %v149 = vunpack.c.l.b16 %v96
    %v150 = vunpack.c.h.b16 %v96
    %v151 = vpack.c.b16 %v121, %v119
    %v152 = vpack.c.b16 %v122, %v120
    %v153 = vpack.c.b16 %v125, %v123
    %v154 = vpack.c.b16 %v126, %v124
    %v155 = vpack.c.b16 %v129, %v127
    %v156 = vpack.c.b16 %v130, %v128
    %v157 = vpack.c.b16 %v133, %v131
    %v158 = vpack.c.b16 %v134, %v132
    %v159 = vpack.c.b16 %v137, %v135
    %v160 = vpack.c.b16 %v138, %v136
    %v161 = vpack.c.b16 %v141, %v139
    %v162 = vpack.c.b16 %v142, %v140
    %v163 = vpack.c.b16 %v145, %v143
    %v164 = vpack.c.b16 %v146, %v144
    %v165 = vpack.c.b16 %v149, %v147
    %v166 = vpack.c.b16 %v150, %v148
    %183 = vmatpush.bf16.msra.mxu0 %v165
    %184 = vmatpush.bf16.msra.mxu0 %v163
    %185 = vmatpush.bf16.msra.mxu0 %v161
    %186 = vmatpush.bf16.msra.mxu0 %v159
    %187 = vmatpush.bf16.msra.mxu0 %v157
    %188 = vmatpush.bf16.msra.mxu0 %v155
    %189 = vmatpush.bf16.msra.mxu0 %v153
    %190 = vmatpush.bf16.msra.mxu0 %v151
    %191 = vmatmul.bf16.gmra.mxu0 %v80
    %v192 = vpop.f32.mrf.mxu0
    %v193 = vadd.f32 %v99, %v192
    %v194 = vpop.f32.mrf.mxu0
    %195 = vdwg.mxu0
    %196 = vmatpush.bf16.msra.mxu0 %v166
    %197 = vmatpush.bf16.msra.mxu0 %v164
    %198 = vmatpush.bf16.msra.mxu0 %v162
    %199 = vmatpush.bf16.msra.mxu0 %v160
    %200 = vmatpush.bf16.msra.mxu0 %v158
    %201 = vmatpush.bf16.msra.mxu0 %v156
    %202 = vmatpush.bf16.msra.mxu0 %v154
    %203 = vmatpush.bf16.msra.mxu0 %v152
    %204 = vmatmul.bf16.gmra.mxu0 %v80
    %v205 = vpop.f32.mrf.mxu0
    %v206 = vadd.f32 %v100, %v205
    %v207 = vpop.f32.mrf.mxu0
    %208 = vdwg.mxu0
    %v209 = vmul.f32 %v193, 0.5
    %v210 = vmul.f32 %v193, 0.70710677
    %v211 = vmul.f32 %v210, %v210
    %v212 = vmin.f32 16.0, %v211
    %v213 = vmul.f32 %v212, 2.1237322e-06
    %v214 = vadd.f32 %v213, 0.00028619796
    %v215 = vmul.f32 %v212, %v214
    %v216 = vadd.f32 %v215, 0.0036580483
    %v217 = vmul.f32 %v212, %v216
    %v218 = vadd.f32 %v217, 0.05243302
    %v219 = vmul.f32 %v212, %v218
    %v220 = vadd.f32 %v219, 0.18741608
    %v221 = vmul.f32 %v212, %v220
    %v222 = vadd.f32 %v221, 1.1283791
    %v223 = vmul.f32 %v210, %v222
    %v224 = vmul.f32 %v212, 3.8918573e-05
    %v225 = vadd.f32 %v224, 0.001143296
    %v226 = vmul.f32 %v212, %v225
    %v227 = vadd.f32 %v226, 0.014752088
    %v228 = vmul.f32 %v212, %v227
    %v229 = vadd.f32 %v228, 0.112945676
    %v230 = vmul.f32 %v212, %v229
    %v231 = vadd.f32 %v230, 0.4994258
    %v232 = vmul.f32 %v212, %v231
    %v233 = vadd.f32 %v232, 1.0
    %v234 = vrcp.pop %v233
    %v235 = vmul.f32 %v233, %v234
    %v236 = vsub.f32 1.0, %v235
    %v237 = vmul.f32 %v234, %v236
    %v238 = vadd.f32 %v234, %v237
    %vm239 = vweird.f32 %v233
    %vm240 = vweird.f32 %v234
    %vm241 = vmor %vm239, %vm240
    %v242 = vsel %vm241, %v234, %v238
    %v243 = vand.u32 2147483647, %v233
    %vm244 = vcmp.eq.f32.partialorder %v243, 8.507059e+37
    %v245 = vand.u32 %v233, 2147483648
    %v246 = vor.u32 1.1754944e-38, %v245
    %v247 = vsel %vm244, %v246, %v242
    %v248 = vmul.f32 %v223, %v247
    %v249 = vmin.f32 %v248, 1.0
    %v250 = vmax.f32 %v249, -1.0
    %v251 = vadd.f32 %v250, 1.0
    %v252 = vmul.f32 %v209, %v251
    %v253 = vpack.c.bf16 %v252, %v252
    %v254 = vld [vmem:[#allocation8] sm:$0xf]
    %v255 = vld [vmem:[#allocation8 + $0x4] sm:$0xf]
    %v256 = vld [vmem:[#allocation8 + $0x8] sm:$0xf]
    %v257 = vld [vmem:[#allocation8 + $0xc] sm:$0xf]
    %v258 = vld [vmem:[#allocation8 + $0x10] sm:$0xf]
    %v259 = vld [vmem:[#allocation8 + $0x14] sm:$0xf]
    %v260 = vld [vmem:[#allocation8 + $0x18] sm:$0xf]
    %v261 = vld [vmem:[#allocation8 + $0x1c] sm:$0xf]
    %v262 = vld [vmem:[#allocation8 + $0x20] sm:$0xf]
    %v263 = vld [vmem:[#allocation8 + $0x24] sm:$0xf]
    %v264 = vld [vmem:[#allocation8 + $0x28] sm:$0xf]
    %v265 = vld [vmem:[#allocation8 + $0x2c] sm:$0xf]
    %v266 = vld [vmem:[#allocation8 + $0x30] sm:$0xf]
    %v267 = vld [vmem:[#allocation8 + $0x34] sm:$0xf]
    %v268 = vld [vmem:[#allocation8 + $0x38] sm:$0xf]
    %v269 = vld [vmem:[#allocation8 + $0x3c] sm:$0xf]
    %v270 = vld [vmem:[%s4] sm:$0x1]
    %v272 = vperm.slane %v270, 0
    %v290 = vunpack.c.l.b16 %v254
    %v291 = vunpack.c.l.b16 %v255
    %v292 = vunpack.c.l.b16 %v256
    %v293 = vunpack.c.l.b16 %v257
    %v294 = vunpack.c.l.b16 %v258
    %v295 = vunpack.c.l.b16 %v259
    %v296 = vunpack.c.l.b16 %v260
    %v297 = vunpack.c.l.b16 %v261
    %v298 = vunpack.c.l.b16 %v262
    %v299 = vunpack.c.l.b16 %v263
    %v300 = vunpack.c.l.b16 %v264
    %v301 = vunpack.c.l.b16 %v265
    %v302 = vunpack.c.l.b16 %v266
    %v303 = vunpack.c.l.b16 %v267
    %v304 = vunpack.c.l.b16 %v268
    %v305 = vunpack.c.l.b16 %v269
    %v306 = vpack.c.b16 %v291, %v290
    %v307 = vpack.c.b16 %v293, %v292
    %v308 = vpack.c.b16 %v295, %v294
    %v309 = vpack.c.b16 %v297, %v296
    %v310 = vpack.c.b16 %v299, %v298
    %v311 = vpack.c.b16 %v301, %v300
    %v312 = vpack.c.b16 %v303, %v302
    %v313 = vpack.c.b16 %v305, %v304
    %322 = vmatpush.bf16.msra.mxu0 %v313
    %323 = vmatpush.bf16.msra.mxu0 %v312
    %324 = vmatpush.bf16.msra.mxu0 %v311
    %325 = vmatpush.bf16.msra.mxu0 %v310
    %326 = vmatpush.bf16.msra.mxu0 %v309
    %327 = vmatpush.bf16.msra.mxu0 %v308
    %328 = vmatpush.bf16.msra.mxu0 %v307
    %329 = vmatpush.bf16.msra.mxu0 %v306
    %330 = vmatmul.bf16.gmra.mxu0 %v253
    %v331 = vpop.f32.mrf.mxu0
    %v332 = vadd.f32 %v272, %v331
    %v333 = vpop.f32.mrf.mxu0
    %334 = vdwg.mxu0
    %v335 = vmul.f32 %v332, 0.5
    %v336 = vmul.f32 %v332, 0.70710677
    %v337 = vmul.f32 %v336, %v336
    %v338 = vmin.f32 16.0, %v337
    %v339 = vmul.f32 %v338, 2.1237322e-06
    %v340 = vadd.f32 %v339, 0.00028619796
    %v341 = vmul.f32 %v338, %v340
    %v342 = vadd.f32 %v341, 0.0036580483
    %v343 = vmul.f32 %v338, %v342
    %v344 = vadd.f32 %v343, 0.05243302
    %v345 = vmul.f32 %v338, %v344
    %v346 = vadd.f32 %v345, 0.18741608
    %v347 = vmul.f32 %v338, %v346
    %v348 = vadd.f32 %v347, 1.1283791
    %v349 = vmul.f32 %v336, %v348
    %v350 = vmul.f32 %v338, 3.8918573e-05
    %v351 = vadd.f32 %v350, 0.001143296
    %v352 = vmul.f32 %v338, %v351
    %v353 = vadd.f32 %v352, 0.014752088
    %v354 = vmul.f32 %v338, %v353
    %v355 = vadd.f32 %v354, 0.112945676
    %v356 = vmul.f32 %v338, %v355
    %v357 = vadd.f32 %v356, 0.4994258
    %v358 = vmul.f32 %v338, %v357
    %v359 = vadd.f32 %v358, 1.0
    %v360 = vrcp.pop %v359
    %v361 = vmul.f32 %v359, %v360
    %v362 = vsub.f32 1.0, %v361
    %v363 = vmul.f32 %v360, %v362
    %v364 = vadd.f32 %v360, %v363
    %vm365 = vweird.f32 %v359
    %vm366 = vweird.f32 %v360
    %vm367 = vmor %vm365, %vm366
    %v368 = vsel %vm367, %v360, %v364
    %v369 = vand.u32 2147483647, %v359
    %vm370 = vcmp.eq.f32.partialorder %v369, 8.507059e+37
    %v371 = vand.u32 %v359, 2147483648
    %v372 = vor.u32 1.1754944e-38, %v371
    %v373 = vsel %vm370, %v372, %v368
    %v374 = vmul.f32 %v349, %v373
    %v375 = vmin.f32 %v374, 1.0
    %v376 = vmax.f32 %v375, -1.0
    %v377 = vadd.f32 %v376, 1.0
    %v378 = vmul.f32 %v335, %v377
    %v379 = vadd.f32 %v378, %v206
    %v380 = vpack.c.bf16 %v379, %v379
    %381 = vst [vmem:[#allocation10] sm:$0xf] %v380
    // Predicated region
    $region38: #{tpu_custom_call.1} parent=1 // pred_check
      _
    $region39: #{tpu_custom_call.1} parent=1 // pred_check_branch
      %383 = sbr.rel (0) target = $region41
    $region40: #{tpu_custom_call.1} parent=1 // pred_region
      %385 = vsyncadd [#allocation4], 0
      %s387 = sshll.u32 [#allocation10], 4
      %s388 = int_to_ptr.vmem [resolvable:$true] %s387
      %s389 = sshll.u32 %s5, 4
      %s390 = int_to_ptr.hbm [resolvable:$true] %s389
      %392 = dma.vmem_to_hbm [thread:$0]  %s388, 64, %s390, [#allocation4]
    $region41: #{tpu_custom_call.1} parent=1 // pred_fallthru
      _
    // Predicated region
    $region42: #{tpu_custom_call.1} parent=1 // pred_check
      _
    $region43: #{tpu_custom_call.1} parent=1 // pred_check_branch
      %394 = sbr.rel (0) target = $region45
    $region44: #{tpu_custom_call.1} parent=1 // pred_region
      %396 = dma.done [#allocation4], 64
    $region45: #{tpu_custom_call.1} parent=1 // pred_fallthru
      _
    %397 = vsyncpa [#allocation3], 1
    %398 = vsyncpa [#allocation6], 1
    %399 = vsyncpa [#allocation9], 1
    %400 = vsyncpa [#allocation4], 1

</llo_original>
